<compile_context>
chip_gen: v7x
topology: tpu7x:2x2x1
jax: 0.10.0
libtpu: 0.0.40
codegen_flags: <defaults>
</compile_context>

<pallas_src>
import jax
import jax.numpy as jnp
from jax.experimental import pallas as pl
from jax.experimental.pallas import tpu as pltpu


def _memguard_kernel(logits_ref, out_ref):
    x = logits_ref[...]                     # (TB, C), native dtype
    tb, c = x.shape

    # argmax over classes on the raw logits (softmax elided -- see header).
    row_max = jnp.max(x, axis=1, keepdims=True)                    # XLU reduce
    col = jax.lax.broadcasted_iota(jnp.int32, (tb, c), 1)
    is_max = x == row_max
    # First-occurrence argmax (matches torch .max(1)[1] / jnp.argmax on ties).
    pred = jnp.min(jnp.where(is_max, col, c), axis=1, keepdims=True)   # (TB, 1)

    epsilon = 0.001
    on_score = 1.0 / c + epsilon
    off_score = 1.0 / c - epsilon / (c - 1)

    out = jnp.where(col == pred,
                    jnp.float32(on_score),
                    jnp.float32(off_score))
    out_ref[...] = out.astype(out_ref.dtype)


def _pick_block_rows(B, C, itemsize, vmem_budget_bytes=8 * 1024 * 1024):
    """Rows per tile, sized so double-buffered in+out tiles fit a conservative
    VMEM budget on every TPU generation (v5e 16 MiB / v6e 32 MiB / v7x 32 MiB
    scoped defaults).  VMEM tiles pad the lane (last) dim up to 128, so a
    (TB, C) tile really occupies TB * round_up(C, 128) * itemsize bytes."""
    padded_c = ((C + 127) // 128) * 128
    per_row = padded_c * max(int(itemsize), 4)   # conservative for packed dtypes
    tb = vmem_budget_bytes // (4 * per_row)      # in+out, double-buffered
    tb = (tb // 32) * 32                         # sublane-tile aligned for any dtype
    tb = max(32, min(tb, 8192))
    if tb >= B:
        return B                                 # single full-extent block
    return tb


def memguard(logits, *, block_rows=None):
    """logits: (B, C) array. Returns defended scores, same shape/dtype."""
    B, C = logits.shape
    if C < 2:
        raise ValueError("MemGuard requires n_classes >= 2 "
                         "(off_score = 1/C - eps/(C-1) divides by C-1).")

    tb = _pick_block_rows(B, C, logits.dtype.itemsize) if block_rows is None else block_rows
    tb = min(tb, B)
    grid = (pl.cdiv(B, tb),)

    # TODO(synk): vocab-scale C (>~8-32K classes) would want a second
    # (reduction) grid axis over C with a running (max, argmax) scratch and a
    # pl.when finalize; unnecessary at classifier-sized C.
    return pl.pallas_call(
        _memguard_kernel,
        out_shape=jax.ShapeDtypeStruct((B, C), logits.dtype),
        grid=grid,
        in_specs=[pl.BlockSpec((tb, C), lambda i: (i, 0))],
        out_specs=pl.BlockSpec((tb, C), lambda i: (i, 0)),
        compiler_params=pltpu.CompilerParams(
            dimension_semantics=("parallel",)),
    )(logits)


def _memguard_ref(logits):
    """Pure-JAX reference.  argmax(softmax(x)) == argmax(x); use raw-logit
    argmax so reference and kernel share tie-breaking (first occurrence)."""
    B, C = logits.shape
    eps = 0.001
    on = 1.0 / C + eps
    off = 1.0 / C - eps / (C - 1)
    pred = jnp.argmax(logits, axis=1)
    out = jnp.full((B, C), off, dtype=jnp.float32)
    out = out.at[jnp.arange(B), pred].set(on)
    return out.astype(logits.dtype)


if __name__ == "__main__":
    key = jax.random.PRNGKey(0)
    k1, k2 = jax.random.split(key)

    # Small shape matching the module's convention: (batch, n_classes) logits.
    B, C = 8, 10
    logits = jax.random.normal(k1, (B, C), dtype=jnp.float32)
    out = memguard(logits)
    jax.block_until_ready(out)
    ref = _memguard_ref(logits)
    assert out.shape == (B, C)
    assert jnp.allclose(out, ref, atol=1e-6), (out, ref)

    # Exercise the tiled / pipelined multi-block path over the batch axis.
    B2, C2 = 64, 10
    logits2 = jax.random.normal(k2, (B2, C2), dtype=jnp.float32)
    out2 = memguard(logits2, block_rows=16)          # grid=(4,), (16, 10) blocks
    jax.block_until_ready(out2)
    ref2 = _memguard_ref(logits2)
    assert jnp.allclose(out2, ref2, atol=1e-6), (out2, ref2)

    print("KERNEL_OK")
</pallas_src>

<mosaic_0001>
module attributes {stable_mosaic.version = 11 : i64} {
  func.func @_memguard_kernel(%arg0: i32, %arg1: memref<8x10xf32, #tpu.memory_space<vmem>>, %arg2: memref<8x10xf32, #tpu.memory_space<vmem>>) attributes {dimension_semantics = [#tpu.dimension_semantics<parallel>], iteration_bounds = array<i64: 1>, scalar_prefetch = 0 : i64, scratch_operands = 0 : i64, tpu.core_type = #tpu.core_type<tc>, window_params = [{transform_indices = @transform_0, window_bounds = array<i64: 8, 10>}, {transform_indices = @transform_1, window_bounds = array<i64: 8, 10>}]} {
    %c0 = arith.constant 0 : index
    %c0_0 = arith.constant 0 : index
    %0 = vector.load %arg1[%c0, %c0_0] : memref<8x10xf32, #tpu.memory_space<vmem>>, vector<8x10xf32>
    %cst = arith.constant dense<0xFF800000> : vector<8xf32>
    %1 = vector.multi_reduction <maximumf>, %0, %cst [1] : vector<8x10xf32> to vector<8xf32>
    %2 = vector.shape_cast %1 : vector<8xf32> to vector<8x1xf32>
    %3 = tpu.iota {dimensions = array<i32: 1>} : vector<8x10xi32>
    %4 = vector.broadcast %2 : vector<8x1xf32> to vector<8x10xf32>
    %5 = arith.cmpf oeq, %0, %4 : vector<8x10xf32>
    %c10_i32 = arith.constant 10 : i32
    %6 = vector.broadcast %c10_i32 : i32 to vector<8x10xi32>
    %7 = arith.select %5, %3, %6 : vector<8x10xi1>, vector<8x10xi32>
    %cst_1 = arith.constant dense<2147483647> : vector<8xi32>
    %8 = vector.multi_reduction <minsi>, %7, %cst_1 [1] : vector<8x10xi32> to vector<8xi32>
    %9 = vector.shape_cast %8 : vector<8xi32> to vector<8x1xi32>
    %10 = vector.broadcast %9 : vector<8x1xi32> to vector<8x10xi32>
    %11 = arith.cmpi eq, %3, %10 : vector<8x10xi32>
    %cst_2 = arith.constant 1.010000e-01 : f32
    %cst_3 = arith.constant 0.0998888909 : f32
    %12 = vector.broadcast %cst_2 : f32 to vector<8x10xf32>
    %13 = vector.broadcast %cst_3 : f32 to vector<8x10xf32>
    %14 = arith.select %11, %12, %13 : vector<8x10xi1>, vector<8x10xf32>
    %c0_4 = arith.constant 0 : index
    %c0_5 = arith.constant 0 : index
    %15 = vector.load %arg2[%c0_4, %c0_5] : memref<8x10xf32, #tpu.memory_space<vmem>>, vector<8x10xf32>
    tpu.vector_store %arg2[%c0_4, %c0_5], %14 {strides = array<i32>} : memref<8x10xf32, #tpu.memory_space<vmem>>, vector<8x10xf32>,
    return
  }
  func.func @transform_0(%arg0: i32) -> (i32, i32) {
    %c0_i32 = arith.constant 0 : i32
    %c0_i32_0 = arith.constant 0 : i32
    return %arg0, %c0_i32 : i32, i32
  }
  func.func @transform_1(%arg0: i32) -> (i32, i32) {
    %c0_i32 = arith.constant 0 : i32
    %c0_i32_0 = arith.constant 0 : i32
    return %arg0, %c0_i32 : i32, i32
  }
}

</mosaic_0001>

<llo_original>
// kernel: tpu_custom_call.1
$region0: #{tpu_custom_call.1}
  #allocation0 [shape = 'u32[]', space=smem, size = 0x4, offset = 0x4, fixed_abs, tag = 'smem constant byte address 0x4 - core index']
  #allocation1 [shape = 'u32[144,128]{1,0:T(1,128)}', space=vmem, size = 0x12000, scoped, tag = 'internal scratch']
  %s0 = inlined_call_operand.hbm [shape: f32[8,10], index: 0, kind: input, shape index: {}]
  %s1 = inlined_call_operand.hbm [shape: f32[8,10], index: 1, kind: output, shape index: {}]
  %s2 = sld [smem:[#allocation0]]
  $region18: #{tpu_custom_call.1} parent=0
    _
  %s4 = ssub.s32 1, %s2
  %s5 = scalar_select 0, %s4, %s2
  $region1: #{tpu_custom_call.1} parent=0
    #allocation2 [shape = 'u8[4096]{0}', space=vmem, size = 0x1000, scoped, tag = 'input window, operand 0, single buffered']
    #allocation3 [shape = 's32[1]{0}', space=sflag, size = 0x4, scoped, tag = 'scoped memory for tpu_custom_call.1']
    #allocation4 [shape = 's32[1]{0}', space=sflag, size = 0x4, scoped, tag = 'scoped memory for tpu_custom_call.1']
    #allocation5 [shape = 'u8[4096]{0}', space=vmem, size = 0x1000, scoped, tag = 'output window, operand 0, single buffered']
    %6 = vsyncpa [#allocation3], 0
    %7 = vsyncpa [#allocation4], 0
    // Predicated region
    $region2: #{tpu_custom_call.1} parent=1 // pred_check
      _
    $region3: #{tpu_custom_call.1} parent=1 // pred_check_branch
      %9 = sbr.rel (0) target = $region5
    $region4: #{tpu_custom_call.1} parent=1 // pred_region
      %s11 = ssub.s32 128, 128
      %12 = vsyncadd [#allocation3], %s11
      %s14 = sshll.u32 [#allocation2], 4
      %s15 = int_to_ptr.vmem [resolvable:$true] %s14
      %17 = dma.hbm_to_vmem [thread:$0]  %s0, 128, %s15, [#allocation3]
    $region5: #{tpu_custom_call.1} parent=1 // pred_fallthru
      _
    // Predicated region
    $region6: #{tpu_custom_call.1} parent=1 // pred_check
      _
    $region7: #{tpu_custom_call.1} parent=1 // pred_check_branch
      %19 = sbr.rel (0) target = $region9
    $region8: #{tpu_custom_call.1} parent=1 // pred_region
      %20 = dma.done [#allocation3], 128
    $region9: #{tpu_custom_call.1} parent=1 // pred_fallthru
      _
    %v21 = vld [vmem:[#allocation2] sm:$0xff]
    %vm22 = vcmask 80896
    %v23 = vsel %vm22, %v21, -inf
    %24 = vmax.xlane.f32.xlu0 %v23
    %v25 = vpop.xlane.xlu0 %24
    %v26 = vlaneseq
    %v27 = vand.u32 %v26, 127
    %vm28 = vcmp.eq.f32.partialorder %v21, %v25
    %v29 = vsel %vm28, %v27, 10
    %v30 = vsel %vm22, %v29, 2147483647
    %v31 = vand.u32 %v30, 65535
    %v32 = vshra.s32 %v30, 16
    %v33 = vcvt.s32.f32 %v31
    %v34 = vcvt.s32.f32 %v32
    %35 = vmin.xlane.f32.xlu0 %v34
    %v36 = vpop.xlane.xlu0 %35
    %vm37 = vcmp.eq.f32.partialorder %v34, %v36
    %v38 = vsel %vm37, %v33, inf
    %39 = vmin.xlane.f32.xlu0 %v38
    %v40 = vpop.xlane.xlu0 %39
    %v41 = vcvt.f32.s32 %v40
    %v42 = vcvt.f32.s32 %v36
    %v43 = vshll.u32 %v42, 16
    %v44 = vadd.s32 %v43, %v41
    %vm45 = vcmp.eq.s32.totalorder %v27, %v44
    %v46 = vsel %vm45, 0.101, 0.09988889
    %47 = vst.msk [vmem:[#allocation5] sm:$0xff] %vm22, %v46
    // Predicated region
    $region10: #{tpu_custom_call.1} parent=1 // pred_check
      _
    $region11: #{tpu_custom_call.1} parent=1 // pred_check_branch
      %49 = sbr.rel (0) target = $region13
    $region12: #{tpu_custom_call.1} parent=1 // pred_region
      %s51 = ssub.s32 128, 128
      %52 = vsyncadd [#allocation4], %s51
      %s54 = sshll.u32 [#allocation5], 4
      %s55 = int_to_ptr.vmem [resolvable:$true] %s54
      %57 = dma.vmem_to_hbm [thread:$0]  %s55, 128, %s1, [#allocation4]
    $region13: #{tpu_custom_call.1} parent=1 // pred_fallthru
      _
    // Predicated region
    $region14: #{tpu_custom_call.1} parent=1 // pred_check
      _
    $region15: #{tpu_custom_call.1} parent=1 // pred_check_branch
      %59 = sbr.rel (0) target = $region17
    $region16: #{tpu_custom_call.1} parent=1 // pred_region
      %60 = dma.done [#allocation4], 128
    $region17: #{tpu_custom_call.1} parent=1 // pred_fallthru
      _
    %61 = vsyncpa [#allocation3], 1
    %62 = vsyncpa [#allocation4], 1

</llo_original>
